<compile_context>
chip_gen: v6e
topology: v6e:2x2x1
jax: 0.10.0
libtpu: 0.0.40
codegen_flags: <defaults>
</compile_context>

<pallas_src>
import jax
import jax.numpy as jnp
from jax import lax
from jax.experimental import pallas as pl
from jax.experimental.pallas import tpu as pltpu


def fused_conv_relu_conv_relu(patches_t, w1t, b1, w2t, b2, H, W, out_dtype):
    """Fused conv1(K=9*Cin)+ReLU -> conv2(K=9*C1)+ReLU, transposed layout.

    patches_t: (N, 9*Cin, H*W)  im2col of padded input, K on sublanes
    w1t:       (C1, 9*Cin)      conv1 weights, taps folded into K
    b1:        (C1, 1)
    w2t:       (C2, 9*C1)       conv2 weights, all 9 taps folded into K
    b2:        (C2, 1)
    returns:   (N, C2, H*W)     == per-image NCHW layout (flattened spatial)
    """
    N, K1, HW = patches_t.shape
    C1 = w1t.shape[0]
    C2 = w2t.shape[0]
    assert HW == H * W
    PAD = W + 1                      # flat-index pad covers any (kh,kw) shift

    def kernel(p_ref, w1_ref, b1_ref, w2_ref, b2_ref, o_ref, y1p_ref):
        # ---- conv1: one (C1, K1) x (K1, HW) matmul + bias + ReLU ----
        y1 = jnp.dot(w1_ref[...], p_ref[0],
                     preferred_element_type=jnp.float32)
        y1 = jnp.maximum(y1 + b1_ref[...], 0.0)               # (C1, HW) f32

        # ---- flat zero-padded VMEM intermediate: lanes = [PAD | HW | PAD] --
        # A shift of s = (kh-1)*W + (kw-1) in flat pixel index reads lanes
        # PAD+s .. PAD+s+HW.  Row out-of-bounds lands exactly in the zero
        # pads; column aliasing across row edges is handled by the masks.
        y1p_ref[...] = jnp.zeros_like(y1p_ref)
        y1p_ref[:, PAD:PAD + HW] = y1

        # Column-validity masks along the lane (pixel) axis.
        j = lax.broadcasted_iota(jnp.int32, (1, HW), 1) % W
        valid_l = j > 0              # tap kw=0 (dw=-1) invalid at j==0
        valid_r = j < (W - 1)        # tap kw=2 (dw=+1) invalid at j==W-1

        # ---- conv2: all 9 taps stacked on sublanes -> single K=9*C1 matmul -
        parts = []
        for kh in range(3):
            for kw in range(3):
                s = (kh - 1) * W + (kw - 1)
                sh = y1p_ref[:, PAD + s:PAD + s + HW]          # (C1, HW)
                if kw == 0:
                    sh = jnp.where(valid_l, sh, 0.0)
                elif kw == 2:
                    sh = jnp.where(valid_r, sh, 0.0)
                parts.append(sh)
        patch = jnp.concatenate(parts, axis=0)                 # (9*C1, HW)

        out = jnp.dot(w2_ref[...], patch,
                      preferred_element_type=jnp.float32)
        out = jnp.maximum(out + b2_ref[...], 0.0)              # (C2, HW)
        o_ref[0] = out.astype(o_ref.dtype)                     # lane-dense

    return pl.pallas_call(
        kernel,
        out_shape=jax.ShapeDtypeStruct((N, C2, HW), out_dtype),
        grid_spec=pltpu.PrefetchScalarGridSpec(
            num_scalar_prefetch=0,
            grid=(N,),
            in_specs=[
                pl.BlockSpec((1, K1, HW), lambda n: (n, 0, 0)),
                pl.BlockSpec((C1, K1), lambda n: (0, 0)),
                pl.BlockSpec((C1, 1), lambda n: (0, 0)),
                pl.BlockSpec((C2, 9 * C1), lambda n: (0, 0)),
                pl.BlockSpec((C2, 1), lambda n: (0, 0)),
            ],
            out_specs=pl.BlockSpec((1, C2, HW), lambda n: (n, 0, 0)),
            scratch_shapes=[pltpu.VMEM((C1, HW + 2 * PAD), jnp.float32)],
        ),
        compiler_params=pltpu.CompilerParams(
            dimension_semantics=("parallel",)),
    )(patches_t, w1t, b1, w2t, b2)


def model_forward(x_nchw, params):
    """Reproduces Model.forward. Input/output are NCHW, weights OIHW (PyTorch)."""
    w1, b1, w2, b2 = params
    N, Cin, H, W = x_nchw.shape
    C1 = w1.shape[0]
    C2 = w2.shape[0]

    # SAME pad for conv1 and im2col with K on sublanes, pixels on lanes.
    # TODO(synk): for large H,W move this im2col inside the kernel (it
    # inflates conv1 HBM reads 9x); irrelevant at 16x16.
    xp = jnp.pad(x_nchw, ((0, 0), (0, 0), (1, 1), (1, 1)))
    patches_t = jnp.concatenate(
        [xp[:, :, kh:kh + H, kw:kw + W].reshape(N, Cin, H * W)
         for kh in range(3) for kw in range(3)],
        axis=1)                                    # (N, 9*Cin, HW), K = kh,kw,c

    w1t = jnp.transpose(w1, (0, 2, 3, 1)).reshape(C1, 9 * Cin)   # [co, kh*3Cin+kw*Cin+c]
    w2t = jnp.transpose(w2, (0, 2, 3, 1)).reshape(C2, 9 * C1)    # [co, (kh*3+kw)*C1+c]

    y = fused_conv_relu_conv_relu(patches_t, w1t, b1.reshape(C1, 1),
                                  w2t, b2.reshape(C2, 1), H, W, x_nchw.dtype)
    return y.reshape(N, C2, H, W)                  # already NCHW; free reshape


def reference_forward(x_nchw, params):
    """Pure-JAX reference using lax.conv_general_dilated (for verification)."""
    w1, b1, w2, b2 = params
    dn = ("NCHW", "OIHW", "NCHW")

    def conv(x, w, b):
        y = lax.conv_general_dilated(
            x, w, window_strides=(1, 1), padding="SAME", dimension_numbers=dn)
        return jnp.maximum(y + b[None, :, None, None], 0.0)

    return conv(conv(x_nchw, w1, b1), w2, b2)


if __name__ == "__main__":
    key = jax.random.PRNGKey(0)
    k_x, k_w1, k_b1, k_w2, k_b2 = jax.random.split(key, 5)

    # Small shapes consistent with the module: batch=2, Cin=3, spatial=16.
    N, Cin, H, W = 2, 3, 16, 16
    C1, C2 = 32, 64

    x = jax.random.normal(k_x, (N, Cin, H, W), jnp.float32)

    # Deterministic synthetic parameters in PyTorch OIHW layout.
    w1 = jax.random.normal(k_w1, (C1, Cin, 3, 3), jnp.float32) * 0.1
    b1 = jax.random.normal(k_b1, (C1,), jnp.float32) * 0.1
    w2 = jax.random.normal(k_w2, (C2, C1, 3, 3), jnp.float32) * 0.1
    b2 = jax.random.normal(k_b2, (C2,), jnp.float32) * 0.1
    params = (w1, b1, w2, b2)

    out = jax.block_until_ready(model_forward(x, params))
    ref = jax.block_until_ready(reference_forward(x, params))

    assert out.shape == (N, C2, H, W), out.shape
    max_err = float(jnp.max(jnp.abs(out - ref)))
    assert max_err < 1e-4, max_err

    print("KERNEL_OK")
</pallas_src>

<mosaic_0001>
module attributes {stable_mosaic.version = 11 : i64} {
  func.func @kernel(%arg0: i32, %arg1: memref<1x27x256xf32, #tpu.memory_space<vmem>>, %arg2: memref<32x27xf32, #tpu.memory_space<vmem>>, %arg3: memref<32x1xf32, #tpu.memory_space<vmem>>, %arg4: memref<64x288xf32, #tpu.memory_space<vmem>>, %arg5: memref<64x1xf32, #tpu.memory_space<vmem>>, %arg6: memref<1x64x256xf32, #tpu.memory_space<vmem>>, %arg7: memref<32x290xf32, #tpu.memory_space<vmem>>) attributes {dimension_semantics = [#tpu.dimension_semantics<parallel>], iteration_bounds = array<i64: 2>, scalar_prefetch = 0 : i64, scratch_operands = 1 : i64, tpu.core_type = #tpu.core_type<tc>, window_params = [{transform_indices = @transform_0, window_bounds = array<i64: 1, 27, 256>}, {pipeline_mode = #tpu.pipeline_mode<synchronous>, transform_indices = @transform_1, window_bounds = array<i64: 32, 27>}, {pipeline_mode = #tpu.pipeline_mode<synchronous>, transform_indices = @transform_2, window_bounds = array<i64: 32, 1>}, {pipeline_mode = #tpu.pipeline_mode<synchronous>, transform_indices = @transform_3, window_bounds = array<i64: 64, 288>}, {pipeline_mode = #tpu.pipeline_mode<synchronous>, transform_indices = @transform_4, window_bounds = array<i64: 64, 1>}, {transform_indices = @transform_5, window_bounds = array<i64: 1, 64, 256>}]} {
    %c0 = arith.constant 0 : index
    %c0_0 = arith.constant 0 : index
    %0 = vector.load %arg2[%c0, %c0_0] : memref<32x27xf32, #tpu.memory_space<vmem>>, vector<32x27xf32>
    %c0_1 = arith.constant 0 : index
    %c0_2 = arith.constant 0 : index
    %c0_3 = arith.constant 0 : index
    %1 = vector.load %arg1[%c0_1, %c0_2, %c0_3] : memref<1x27x256xf32, #tpu.memory_space<vmem>>, vector<1x27x256xf32>
    %2 = vector.shape_cast %1 : vector<1x27x256xf32> to vector<27x256xf32>
    %cst = arith.constant dense<0.000000e+00> : vector<32x256xf32>
    %3 = tpu.matmul %0, %2, %cst {dimension_numbers = #tpu.dot_dimension_numbers<[1], [0], [0], [1], [0, 0, 1, 1], [], []>} : vector<32x27xf32>, vector<27x256xf32>, vector<32x256xf32> -> vector<32x256xf32>
    %c0_4 = arith.constant 0 : index
    %c0_5 = arith.constant 0 : index
    %4 = vector.load %arg3[%c0_4, %c0_5] : memref<32x1xf32, #tpu.memory_space<vmem>>, vector<32x1xf32>
    %5 = vector.broadcast %4 : vector<32x1xf32> to vector<32x256xf32>
    %6 = arith.addf %3, %5 : vector<32x256xf32>
    %cst_6 = arith.constant 0.000000e+00 : f32
    %7 = vector.broadcast %cst_6 : f32 to vector<32x256xf32>
    %8 = arith.maximumf %6, %7 : vector<32x256xf32>
    %cst_7 = arith.constant 0.000000e+00 : f32
    %9 = vector.broadcast %cst_7 : f32 to vector<32x290xf32>
    %c0_8 = arith.constant 0 : index
    %c0_9 = arith.constant 0 : index
    %10 = vector.load %arg7[%c0_8, %c0_9] : memref<32x290xf32, #tpu.memory_space<vmem>>, vector<32x290xf32>
    tpu.vector_store %arg7[%c0_8, %c0_9], %9 {strides = array<i32>} : memref<32x290xf32, #tpu.memory_space<vmem>>, vector<32x290xf32>,
    %c0_10 = arith.constant 0 : index
    %c17 = arith.constant 17 : index
    %11 = vector.load %arg7[%c0_10, %c17] : memref<32x290xf32, #tpu.memory_space<vmem>>, vector<32x256xf32>
    tpu.vector_store %arg7[%c0_10, %c17], %8 {strides = array<i32>} : memref<32x290xf32, #tpu.memory_space<vmem>>, vector<32x256xf32>,
    %12 = tpu.iota {dimensions = array<i32: 1>} : vector<1x256xi32>
    %c16_i32 = arith.constant 16 : i32
    %c0_i32 = arith.constant 0 : i32
    %13 = arith.cmpi eq, %c16_i32, %c0_i32 : i32
    %c1_i32 = arith.constant 1 : i32
    %14 = arith.select %13, %c1_i32, %c16_i32 : i32
    %15 = vector.broadcast %14 : i32 to vector<1x256xi32>
    %16 = arith.remsi %12, %15 : vector<1x256xi32>
    %c0_i32_11 = arith.constant 0 : i32
    %17 = vector.broadcast %c0_i32_11 : i32 to vector<1x256xi32>
    %18 = arith.cmpi ne, %16, %17 : vector<1x256xi32>
    %c0_i32_12 = arith.constant 0 : i32
    %19 = vector.broadcast %c0_i32_12 : i32 to vector<1x256xi32>
    %20 = arith.cmpi slt, %16, %19 : vector<1x256xi32>
    %c0_i32_13 = arith.constant 0 : i32
    %21 = arith.cmpi slt, %14, %c0_i32_13 : i32
    %22 = vector.broadcast %21 : i1 to vector<1x256xi1>
    %23 = vector.broadcast %22 : vector<1x256xi1> to vector<1x256xi1>
    %24 = arith.xori %20, %23 : vector<1x256xi1>
    %25 = arith.andi %24, %18 : vector<1x256xi1>
    %26 = vector.broadcast %14 : i32 to vector<1x256xi32>
    %27 = arith.addi %16, %26 : vector<1x256xi32>
    %28 = arith.select %25, %27, %16 : vector<1x256xi1>, vector<1x256xi32>
    %c0_i32_14 = arith.constant 0 : i32
    %29 = vector.broadcast %c0_i32_14 : i32 to vector<1x256xi32>
    %30 = arith.cmpi sgt, %28, %29 : vector<1x256xi32>
    %c15_i32 = arith.constant 15 : i32
    %31 = vector.broadcast %c15_i32 : i32 to vector<1x256xi32>
    %32 = arith.cmpi slt, %28, %31 : vector<1x256xi32>
    %c0_15 = arith.constant 0 : index
    %c0_16 = arith.constant 0 : index
    %33 = vector.load %arg7[%c0_15, %c0_16] : memref<32x290xf32, #tpu.memory_space<vmem>>, vector<32x256xf32>
    %cst_17 = arith.constant 0.000000e+00 : f32
    %34 = vector.shape_cast %30 : vector<1x256xi1> to vector<1x256xi1>
    %35 = vector.broadcast %34 : vector<1x256xi1> to vector<32x256xi1>
    %36 = vector.broadcast %cst_17 : f32 to vector<32x256xf32>
    %37 = arith.select %35, %33, %36 : vector<32x256xi1>, vector<32x256xf32>
    %c0_18 = arith.constant 0 : index
    %c1 = arith.constant 1 : index
    %38 = vector.load %arg7[%c0_18, %c1] : memref<32x290xf32, #tpu.memory_space<vmem>>, vector<32x256xf32>
    %c0_19 = arith.constant 0 : index
    %c2 = arith.constant 2 : index
    %39 = vector.load %arg7[%c0_19, %c2] : memref<32x290xf32, #tpu.memory_space<vmem>>, vector<32x256xf32>
    %cst_20 = arith.constant 0.000000e+00 : f32
    %40 = vector.shape_cast %32 : vector<1x256xi1> to vector<1x256xi1>
    %41 = vector.broadcast %40 : vector<1x256xi1> to vector<32x256xi1>
    %42 = vector.broadcast %cst_20 : f32 to vector<32x256xf32>
    %43 = arith.select %41, %39, %42 : vector<32x256xi1>, vector<32x256xf32>
    %c0_21 = arith.constant 0 : index
    %c16 = arith.constant 16 : index
    %44 = vector.load %arg7[%c0_21, %c16] : memref<32x290xf32, #tpu.memory_space<vmem>>, vector<32x256xf32>
    %cst_22 = arith.constant 0.000000e+00 : f32
    %45 = vector.shape_cast %30 : vector<1x256xi1> to vector<1x256xi1>
    %46 = vector.broadcast %45 : vector<1x256xi1> to vector<32x256xi1>
    %47 = vector.broadcast %cst_22 : f32 to vector<32x256xf32>
    %48 = arith.select %46, %44, %47 : vector<32x256xi1>, vector<32x256xf32>
    %c0_23 = arith.constant 0 : index
    %c17_24 = arith.constant 17 : index
    %49 = vector.load %arg7[%c0_23, %c17_24] : memref<32x290xf32, #tpu.memory_space<vmem>>, vector<32x256xf32>
    %c0_25 = arith.constant 0 : index
    %c18 = arith.constant 18 : index
    %50 = vector.load %arg7[%c0_25, %c18] : memref<32x290xf32, #tpu.memory_space<vmem>>, vector<32x256xf32>
    %cst_26 = arith.constant 0.000000e+00 : f32
    %51 = vector.shape_cast %32 : vector<1x256xi1> to vector<1x256xi1>
    %52 = vector.broadcast %51 : vector<1x256xi1> to vector<32x256xi1>
    %53 = vector.broadcast %cst_26 : f32 to vector<32x256xf32>
    %54 = arith.select %52, %50, %53 : vector<32x256xi1>, vector<32x256xf32>
    %c0_27 = arith.constant 0 : index
    %c32 = arith.constant 32 : index
    %55 = vector.load %arg7[%c0_27, %c32] : memref<32x290xf32, #tpu.memory_space<vmem>>, vector<32x256xf32>
    %cst_28 = arith.constant 0.000000e+00 : f32
    %56 = vector.shape_cast %30 : vector<1x256xi1> to vector<1x256xi1>
    %57 = vector.broadcast %56 : vector<1x256xi1> to vector<32x256xi1>
    %58 = vector.broadcast %cst_28 : f32 to vector<32x256xf32>
    %59 = arith.select %57, %55, %58 : vector<32x256xi1>, vector<32x256xf32>
    %c0_29 = arith.constant 0 : index
    %c33 = arith.constant 33 : index
    %60 = vector.load %arg7[%c0_29, %c33] : memref<32x290xf32, #tpu.memory_space<vmem>>, vector<32x256xf32>
    %c0_30 = arith.constant 0 : index
    %c34 = arith.constant 34 : index
    %61 = vector.load %arg7[%c0_30, %c34] : memref<32x290xf32, #tpu.memory_space<vmem>>, vector<32x256xf32>
    %cst_31 = arith.constant 0.000000e+00 : f32
    %62 = vector.shape_cast %32 : vector<1x256xi1> to vector<1x256xi1>
    %63 = vector.broadcast %62 : vector<1x256xi1> to vector<32x256xi1>
    %64 = vector.broadcast %cst_31 : f32 to vector<32x256xf32>
    %65 = arith.select %63, %61, %64 : vector<32x256xi1>, vector<32x256xf32>
    %66 = tpu.concatenate %37, %38, %43, %48, %49, %54, %59, %60, %65 in 0 : vector<32x256xf32>, vector<32x256xf32>, vector<32x256xf32>, vector<32x256xf32>, vector<32x256xf32>, vector<32x256xf32>, vector<32x256xf32>, vector<32x256xf32>, vector<32x256xf32> -> vector<288x256xf32>
    %c0_32 = arith.constant 0 : index
    %c0_33 = arith.constant 0 : index
    %67 = vector.load %arg4[%c0_32, %c0_33] : memref<64x288xf32, #tpu.memory_space<vmem>>, vector<64x288xf32>
    %cst_34 = arith.constant dense<0.000000e+00> : vector<64x256xf32>
    %68 = tpu.matmul %67, %66, %cst_34 {dimension_numbers = #tpu.dot_dimension_numbers<[1], [0], [0], [1], [0, 0, 1, 1], [], []>} : vector<64x288xf32>, vector<288x256xf32>, vector<64x256xf32> -> vector<64x256xf32>
    %c0_35 = arith.constant 0 : index
    %c0_36 = arith.constant 0 : index
    %69 = vector.load %arg5[%c0_35, %c0_36] : memref<64x1xf32, #tpu.memory_space<vmem>>, vector<64x1xf32>
    %70 = vector.broadcast %69 : vector<64x1xf32> to vector<64x256xf32>
    %71 = arith.addf %68, %70 : vector<64x256xf32>
    %cst_37 = arith.constant 0.000000e+00 : f32
    %72 = vector.broadcast %cst_37 : f32 to vector<64x256xf32>
    %73 = arith.maximumf %71, %72 : vector<64x256xf32>
    %c0_38 = arith.constant 0 : index
    %c0_39 = arith.constant 0 : index
    %c0_40 = arith.constant 0 : index
    %74 = vector.load %arg6[%c0_38, %c0_39, %c0_40] : memref<1x64x256xf32, #tpu.memory_space<vmem>>, vector<1x64x256xf32>
    %75 = vector.shape_cast %74 : vector<1x64x256xf32> to vector<64x256xf32>
    %76 = vector.shape_cast %73 : vector<64x256xf32> to vector<1x64x256xf32>
    tpu.vector_store %arg6[%c0_38, %c0_39, %c0_40], %76 {strides = array<i32>} : memref<1x64x256xf32, #tpu.memory_space<vmem>>, vector<1x64x256xf32>,
    return
  }
  func.func @transform_0(%arg0: i32) -> (i32, i32, i32) {
    %c0_i32 = arith.constant 0 : i32
    %c0_i32_0 = arith.constant 0 : i32
    %c0_i32_1 = arith.constant 0 : i32
    return %arg0, %c0_i32, %c0_i32_0 : i32, i32, i32
  }
  func.func @transform_1(%arg0: i32) -> (i32, i32) {
    %c0_i32 = arith.constant 0 : i32
    %c0_i32_0 = arith.constant 0 : i32
    %c0_i32_1 = arith.constant 0 : i32
    return %c0_i32, %c0_i32_0 : i32, i32
  }
  func.func @transform_2(%arg0: i32) -> (i32, i32) {
    %c0_i32 = arith.constant 0 : i32
    %c0_i32_0 = arith.constant 0 : i32
    %c0_i32_1 = arith.constant 0 : i32
    return %c0_i32, %c0_i32_0 : i32, i32
  }
  func.func @transform_3(%arg0: i32) -> (i32, i32) {
    %c0_i32 = arith.constant 0 : i32
    %c0_i32_0 = arith.constant 0 : i32
    %c0_i32_1 = arith.constant 0 : i32
    return %c0_i32, %c0_i32_0 : i32, i32
  }
  func.func @transform_4(%arg0: i32) -> (i32, i32) {
    %c0_i32 = arith.constant 0 : i32
    %c0_i32_0 = arith.constant 0 : i32
    %c0_i32_1 = arith.constant 0 : i32
    return %c0_i32, %c0_i32_0 : i32, i32
  }
  func.func @transform_5(%arg0: i32) -> (i32, i32, i32) {
    %c0_i32 = arith.constant 0 : i32
    %c0_i32_0 = arith.constant 0 : i32
    %c0_i32_1 = arith.constant 0 : i32
    return %arg0, %c0_i32, %c0_i32_0 : i32, i32, i32
  }
}

</mosaic_0001>

<llo_original>
// kernel: tpu_custom_call.1
$region0: #{tpu_custom_call.1}
  #allocation0 [shape = 'u32[]', space=smem, size = 0x4, offset = 0x4, fixed_abs, tag = 'smem constant byte address 0x4 - core index']
  #allocation1 [shape = 'u32[144,128]{1,0:T(1,128)}', space=vmem, size = 0x12000, scoped, tag = 'internal scratch']
  #allocation2 [shape = 'f32[32,290]{1,0:T(8,128)}', space=vmem, size = 0xc000, scoped, tag = 'scratch operand']
  %s0 = inlined_call_operand.vmem [shape: f32[2,27,256], index: 0, kind: input, shape index: {}]
  %s1 = inlined_call_operand.vmem [shape: f32[32,27], index: 1, kind: input, shape index: {}]
  %s2 = inlined_call_operand.vmem [shape: f32[32,1], index: 2, kind: input, shape index: {}]
  %s3 = inlined_call_operand.vmem [shape: f32[64,288], index: 3, kind: input, shape index: {}]
  %s4 = inlined_call_operand.vmem [shape: f32[64,1], index: 4, kind: input, shape index: {}]
  %s5 = inlined_call_operand.hbm [shape: f32[2,64,256], index: 5, kind: output, shape index: {}]
  %s6 = sld [smem:[#allocation0]]
  $region53: #{tpu_custom_call.1} parent=0
    _
  %s8 = ssub.s32 1, %s6
  %s9 = scalar_select 0, %s8, %s6
  $region1: #{tpu_custom_call.1} parent=0
    #allocation3 [shape = 'u8[131072]{0}', space=vmem, size = 0x20000, scoped, tag = 'output window, operand 0']
    #allocation4 [shape = 's32[2]{0}', space=sflag, size = 0x8, scoped, tag = 'scoped memory for tpu_custom_call.1']
    %10 = vsyncpa [#allocation4], 0
    %s11 = scalar_lea.sflag [#allocation4], 1
    %12 = vsyncpa %s11, 0
    loop: start=0, step=1, limit=4
    $region2: #{tpu_custom_call.1} parent=1 // loop_pre_header
      _
    $region3: #{tpu_custom_call.1} parent=1 // loop_header
      %s14 = sphi 0, %s18
      %p15 = scmp.ge.s32.totalorder %s14, 4
      %s24 = sphi 0, %s26
      %s27 = sphi 0, %s24
      %s28 = sphi 0, %s27
      %s44 = sphi 0, %s28
      %s48 = sphi 0, %s48
      %s50 = sphi 0, %s48
      %s51 = sphi 0, %s50
      %s65 = sphi 0, %s51
      %s69 = sphi 0, %s69
      %s71 = sphi 0, %s69
      %s72 = sphi 0, %s71
      %s86 = sphi 0, %s72
      %s90 = sphi 0, %s90
      %s92 = sphi 0, %s90
      %s93 = sphi 0, %s92
      %s107 = sphi 0, %s93
      %s111 = sphi 0, %s111
      %s113 = sphi 0, %s111
      %s114 = sphi 0, %s113
      %s128 = sphi 0, %s114
      %s134 = sphi 0, %s136
      %s137 = sphi 0, %s134
      %s138 = sphi 0, %s137
      %s154 = sphi 0, %s138
    $region4: #{tpu_custom_call.1} parent=1 // loop_header_branch
      %17 = sbr.rel (%p15) target = $region8
    $region5: #{tpu_custom_call.1} parent=1 // loop_body
      %s19 = ssub.s32 %s14, 1
      %s20 = ssub.s32 %s14, 2
      %s21 = sadd.s32 %s14, 1
      %s22 = ssub.s32 %s14, %s21
      %p23 = scmp.eq.s32.totalorder %s22, 0
      %s25 = sadd.s32 %s24, 1
      %s26 = scalar_select %p23, %s24, %s25
      %p29 = pneg %p23
      %p30 = scmp.eq.s32.totalorder %s14, 1
      %p31 = por %p29, %p30
      %p32 = scmp.ne.s32.totalorder %s24, %s27
      %p33 = scmp.eq.s32.totalorder %s14, 0
      %p34 = por %p32, %p33
      %p35 = scmp.ne.s32.totalorder %s24, %s27
      %p36 = scmp.eq.s32.totalorder %s19, 1
      %p37 = por %p35, %p36
      %p38 = scmp.ne.s32.totalorder %s27, %s28
      %p39 = scmp.eq.s32.totalorder %s19, 0
      %p40 = por %p38, %p39
      %p41 = scmp.ne.s32.totalorder %s27, %s28
      %p42 = scmp.eq.s32.totalorder %s20, 1
      %p43 = por %p41, %p42
      %p45 = scmp.ne.s32.totalorder %s28, %s44
      %p46 = scmp.eq.s32.totalorder %s20, 0
      %p47 = por %p45, %p46
      %s49 = sadd.s32 %s48, 1
      %p52 = scmp.eq.s32.totalorder %s14, 1
      %p53 = scmp.ne.s32.totalorder %s48, %s50
      %p54 = scmp.eq.s32.totalorder %s14, 0
      %p55 = por %p53, %p54
      %p56 = scmp.ne.s32.totalorder %s48, %s50
      %p57 = scmp.eq.s32.totalorder %s19, 1
      %p58 = por %p56, %p57
      %p59 = scmp.ne.s32.totalorder %s50, %s51
      %p60 = scmp.eq.s32.totalorder %s19, 0
      %p61 = por %p59, %p60
      %p62 = scmp.ne.s32.totalorder %s50, %s51
      %p63 = scmp.eq.s32.totalorder %s20, 1
      %p64 = por %p62, %p63
      %p66 = scmp.ne.s32.totalorder %s51, %s65
      %p67 = scmp.eq.s32.totalorder %s20, 0
      %p68 = por %p66, %p67
      %s70 = sadd.s32 %s69, 1
      %p73 = scmp.eq.s32.totalorder %s14, 1
      %p74 = scmp.ne.s32.totalorder %s69, %s71
      %p75 = scmp.eq.s32.totalorder %s14, 0
      %p76 = por %p74, %p75
      %p77 = scmp.ne.s32.totalorder %s69, %s71
      %p78 = scmp.eq.s32.totalorder %s19, 1
      %p79 = por %p77, %p78
      %p80 = scmp.ne.s32.totalorder %s71, %s72
      %p81 = scmp.eq.s32.totalorder %s19, 0
      %p82 = por %p80, %p81
      %p83 = scmp.ne.s32.totalorder %s71, %s72
      %p84 = scmp.eq.s32.totalorder %s20, 1
      %p85 = por %p83, %p84
      %p87 = scmp.ne.s32.totalorder %s72, %s86
      %p88 = scmp.eq.s32.totalorder %s20, 0
      %p89 = por %p87, %p88
      %s91 = sadd.s32 %s90, 1
      %p94 = scmp.eq.s32.totalorder %s14, 1
      %p95 = scmp.ne.s32.totalorder %s90, %s92
      %p96 = scmp.eq.s32.totalorder %s14, 0
      %p97 = por %p95, %p96
      %p98 = scmp.ne.s32.totalorder %s90, %s92
      %p99 = scmp.eq.s32.totalorder %s19, 1
      %p100 = por %p98, %p99
      %p101 = scmp.ne.s32.totalorder %s92, %s93
      %p102 = scmp.eq.s32.totalorder %s19, 0
      %p103 = por %p101, %p102
      %p104 = scmp.ne.s32.totalorder %s92, %s93
      %p105 = scmp.eq.s32.totalorder %s20, 1
      %p106 = por %p104, %p105
      %p108 = scmp.ne.s32.totalorder %s93, %s107
      %p109 = scmp.eq.s32.totalorder %s20, 0
      %p110 = por %p108, %p109
      %s112 = sadd.s32 %s111, 1
      %p115 = scmp.eq.s32.totalorder %s14, 1
      %p116 = scmp.ne.s32.totalorder %s111, %s113
      %p117 = scmp.eq.s32.totalorder %s14, 0
      %p118 = por %p116, %p117
      %p119 = scmp.ne.s32.totalorder %s111, %s113
      %p120 = scmp.eq.s32.totalorder %s19, 1
      %p121 = por %p119, %p120
      %p122 = scmp.ne.s32.totalorder %s113, %s114
      %p123 = scmp.eq.s32.totalorder %s19, 0
      %p124 = por %p122, %p123
      %p125 = scmp.ne.s32.totalorder %s113, %s114
      %p126 = scmp.eq.s32.totalorder %s20, 1
      %p127 = por %p125, %p126
      %p129 = scmp.ne.s32.totalorder %s114, %s128
      %p130 = scmp.eq.s32.totalorder %s20, 0
      %p131 = por %p129, %p130
      %s132 = ssub.s32 %s14, %s21
      %p133 = scmp.eq.s32.totalorder %s132, 0
      %s135 = sadd.s32 %s134, 1
      %s136 = scalar_select %p133, %s134, %s135
      %p139 = pneg %p133
      %p140 = scmp.eq.s32.totalorder %s14, 1
      %p141 = por %p139, %p140
      %p142 = scmp.ne.s32.totalorder %s134, %s137
      %p143 = scmp.eq.s32.totalorder %s14, 0
      %p144 = por %p142, %p143
      %p145 = scmp.ne.s32.totalorder %s134, %s137
      %p146 = scmp.eq.s32.totalorder %s19, 1
      %p147 = por %p145, %p146
      %p148 = scmp.ne.s32.totalorder %s137, %s138
      %p149 = scmp.eq.s32.totalorder %s19, 0
      %p150 = por %p148, %p149
      %p151 = scmp.ne.s32.totalorder %s137, %s138
      %p152 = scmp.eq.s32.totalorder %s20, 1
      %p153 = por %p151, %p152
      %p155 = scmp.ne.s32.totalorder %s138, %s154
      %p156 = scmp.eq.s32.totalorder %s20, 0
      %p157 = por %p155, %p156
      %p158 = scmp.le.s32.totalorder 1, %s14
      %p159 = scmp.lt.s32.totalorder %s14, 3
      %p160 = pnand %p158, %p159
      %p161 = pneg %p160
      // Predicated region
      $region9: #{tpu_custom_call.1} parent=5 // pred_check
        _
      $region10: #{tpu_custom_call.1} parent=5 // pred_check_branch
        %163 = sbr.rel (%p160) target = $region12
      $region11: #{tpu_custom_call.1} parent=5 // pred_region
        %s164 = ssub.s32 %s14, 1
        // Predicated region
        $region13: #{tpu_custom_call.1} parent=11 // pred_check
          %p165 = pneg %p61
        $region14: #{tpu_custom_call.1} parent=11 // pred_check_branch
          %167 = sbr.rel (%p165) target = $region16
        $region15: #{tpu_custom_call.1} parent=11 // pred_region
          _
        $region16: #{tpu_custom_call.1} parent=11 // pred_fallthru
          _
        // Predicated region
        $region17: #{tpu_custom_call.1} parent=11 // pred_check
          %p168 = pneg %p82
        $region18: #{tpu_custom_call.1} parent=11 // pred_check_branch
          %170 = sbr.rel (%p168) target = $region20
        $region19: #{tpu_custom_call.1} parent=11 // pred_region
          _
        $region20: #{tpu_custom_call.1} parent=11 // pred_fallthru
          _
        // Predicated region
        $region21: #{tpu_custom_call.1} parent=11 // pred_check
          %p171 = pneg %p103
        $region22: #{tpu_custom_call.1} parent=11 // pred_check_branch
          %173 = sbr.rel (%p171) target = $region24
        $region23: #{tpu_custom_call.1} parent=11 // pred_region
          _
        $region24: #{tpu_custom_call.1} parent=11 // pred_fallthru
          _
        // Predicated region
        $region25: #{tpu_custom_call.1} parent=11 // pred_check
          %p174 = pneg %p124
        $region26: #{tpu_custom_call.1} parent=11 // pred_check_branch
          %176 = sbr.rel (%p174) target = $region28
        $region27: #{tpu_custom_call.1} parent=11 // pred_region
          _
        $region28: #{tpu_custom_call.1} parent=11 // pred_fallthru
          _
      $region12: #{tpu_custom_call.1} parent=5 // pred_fallthru
        _
      %p177 = scmp.lt.s32.totalorder %s14, 2
      // Predicated region
      $region29: #{tpu_custom_call.1} parent=5 // pred_check
        %p178 = pneg %p177
      $region30: #{tpu_custom_call.1} parent=5 // pred_check_branch
        %180 = sbr.rel (%p178) target = $region32
      $region31: #{tpu_custom_call.1} parent=5 // pred_region
        // Predicated region
        $region33: #{tpu_custom_call.1} parent=31 // pred_check
          %p181 = pneg %p34
        $region34: #{tpu_custom_call.1} parent=31 // pred_check_branch
          %183 = sbr.rel (%p181) target = $region36
        $region35: #{tpu_custom_call.1} parent=31 // pred_region
          %p184 = scmp.lt.s32.totalorder %s14, 1
          %s185 = scalar_select %p184, %s14, 1
          %s186 = smul.addr %s185, 8
          %s187 = smul.addr %s186, 8
          %s188 = scalar_lea.vmem %s0, %s187
        $region36: #{tpu_custom_call.1} parent=31 // pred_fallthru
          _
      $region32: #{tpu_custom_call.1} parent=5 // pred_fallthru
        _
      %p189 = scmp.le.s32.totalorder 1, %s14
      %p190 = scmp.lt.s32.totalorder %s14, 3
      %p191 = pnand %p189, %p190
      %p192 = pneg %p191
      // Predicated region
      $region37: #{tpu_custom_call.1} parent=5 // pred_check
        _
      $region38: #{tpu_custom_call.1} parent=5 // pred_check_branch
        %194 = sbr.rel (%p191) target = $region40
      $region39: #{tpu_custom_call.1} parent=5 // pred_region
        %s195 = ssub.s32 %s14, 1
        %p196 = scmp.lt.s32.totalorder %s19, 1
        %s197 = scalar_select %p196, %s19, 1
        %s198 = smul.addr %s197, 8
        %s199 = smul.addr %s198, 8
        %s200 = scalar_lea.vmem %s0, %s199
        %p201 = pneg %p40
        %p202 = pneg %p37
        %p203 = pneg %p61
        %p204 = pneg %p58
        %p205 = pneg %p82
        %p206 = pneg %p79
        %p207 = pneg %p103
        %p208 = pneg %p100
        %p209 = pneg %p124
        %p210 = pneg %p121
        %p211 = pneg %p150
        %p212 = pneg %p147
        %s213 = sand.u32 %s137, 1
        %s214 = scalar_lea.sflag [#allocation4], %s213
        %s215 = sand.u32 %s137, 1
        %s216 = smul.addr %s215, 128
        %s217 = scalar_lea.vmem [#allocation3], %s216
        %p218 = scmp.lt.s32.totalorder %s19, 1
        %s219 = scalar_select %p218, %s19, 1
        %s220 = smul.addr %s219, 8
        %s221 = smul.addr %s220, 8
        %s222 = scalar_lea.vmem %s0, %s221
        %v223 = vld [vmem:[%s1] sm:$0xff]
        %v224 = vld [vmem:[%s1 + $0x8] sm:$0xff]
        %v225 = vld [vmem:[%s1 + $0x10] sm:$0xff]
        %v226 = vld [vmem:[%s1 + $0x18] sm:$0xff]
        %v227 = vld [vmem:[%s222] sm:$0xff]
        %v228 = vld [vmem:[%s222 + $0x8] sm:$0xff]
        %v229 = vld [vmem:[%s222 + $0x10] sm:$0xff]
        %v230 = vld [vmem:[%s222 + $0x18] sm:$0xff]
        %v231 = vld [vmem:[%s222 + $0x20] sm:$0xff]
        %v232 = vld [vmem:[%s222 + $0x28] sm:$0xff]
        %v233 = vld [vmem:[%s222 + $0x30] sm:$0x7]
        %v234 = vld [vmem:[%s222 + $0x38] sm:$0x7]
        %v235 = vld [vmem:[%s2] sm:$0xff]
        %v236 = vld [vmem:[%s2 + $0x8] sm:$0xff]
        %v237 = vld [vmem:[%s2 + $0x10] sm:$0xff]
        %v238 = vld [vmem:[%s2 + $0x18] sm:$0xff]
        %240 = vset.pattern.permute.xlu0 0
        %241 = vperm.xlu0 %240, %v235
        %v242 = vpop.permute.xlu0 %241
        %245 = vset.pattern.permute.xlu0 0
        %246 = vperm.xlu0 %245, %v236
        %v247 = vpop.permute.xlu0 %246
        %250 = vset.pattern.permute.xlu0 0
        %251 = vperm.xlu0 %250, %v237
        %v252 = vpop.permute.xlu0 %251
        %255 = vset.pattern.permute.xlu0 0
        %256 = vperm.xlu0 %255, %v238
        %v257 = vpop.permute.xlu0 %256
        %vm259 = vcmask 220160
        %v261 = vsel %vm259, %v223, 0
        %v264 = vsel %vm259, %v224, 0
        %v267 = vsel %vm259, %v225, 0
        %v270 = vsel %vm259, %v226, 0
        %vm272 = vcmask 1042432
        %v274 = vsel %vm272, %v233, 0
        %v277 = vsel %vm272, %v234, 0
        %279 = vmatprep.subr.mxu0 0.0
        %280 = vmatpush1.msra.mxu0 0.0
        %281 = vmatprep.subr.mxu0 0.0
        %282 = vmatpush1.msra.mxu0 0.0
        %283 = vmatprep.subr.mxu0 0.0
        %284 = vmatpush1.msra.mxu0 0.0
        %285 = vmatprep.subr.mxu0 0.0
        %286 = vmatpush1.msra.mxu0 0.0
        %287 = vmatprep.subr.mxu0 0.0
        %288 = vmatpush1.msra.mxu0 0.0
        %289 = vmatprep.subr.mxu0 0.0
        %290 = vmatpush1.msra.mxu0 0.0
        %291 = vmatprep.subr.mxu0 0.0
        %292 = vmatpush1.msra.mxu0 0.0
        %293 = vmatprep.subr.mxu0 0.0
        %294 = vmatpush1.msra.mxu0 0.0
        %295 = vmatprep.subr.mxu0 0.0
        %296 = vmatpush1.msra.mxu0 0.0
        %297 = vmatprep.subr.mxu0 0.0
        %298 = vmatpush1.msra.mxu0 0.0
        %299 = vmatprep.subr.mxu0 0.0
        %300 = vmatpush1.msra.mxu0 0.0
        %301 = vmatprep.subr.mxu0 0.0
        %302 = vmatpush1.msra.mxu0 0.0
        %303 = vmatprep.subr.mxu0 %v277
        %304 = vmatpush1.msra.mxu0 %v274
        %305 = vmatprep.subr.mxu0 %v232
        %306 = vmatpush1.msra.mxu0 %v231
        %307 = vmatprep.subr.mxu0 %v230
        %308 = vmatpush1.msra.mxu0 %v229
        %309 = vmatprep.subr.mxu0 %v228
        %310 = vmatpush1.msra.mxu0 %v227
        %311 = vmatprep.subr.mxu0 0.0
        %312 = vmatpush2.msra.mxu0 0.0
        %313 = vmatprep.subr.mxu0 0.0
        %314 = vmatpush2.msra.mxu0 0.0
        %315 = vmatprep.subr.mxu0 0.0
        %316 = vmatpush2.msra.mxu0 0.0
        %317 = vmatprep.subr.mxu0 0.0
        %318 = vmatpush2.msra.mxu0 0.0
        %319 = vmatprep.subr.mxu0 0.0
        %320 = vmatpush2.msra.mxu0 0.0
        %321 = vmatprep.subr.mxu0 0.0
        %322 = vmatpush2.msra.mxu0 0.0
        %323 = vmatprep.subr.mxu0 0.0
        %324 = vmatpush2.msra.mxu0 0.0
        %325 = vmatprep.subr.mxu0 0.0
        %326 = vmatpush2.msra.mxu0 0.0
        %327 = vmatprep.subr.mxu0 0.0
        %328 = vmatpush2.msra.mxu0 0.0
        %329 = vmatprep.subr.mxu0 0.0
        %330 = vmatpush2.msra.mxu0 0.0
        %331 = vmatprep.subr.mxu0 0.0
        %332 = vmatpush2.msra.mxu0 0.0
        %333 = vmatprep.subr.mxu0 0.0
        %334 = vmatpush2.msra.mxu0 0.0
        %335 = vmatprep.subr.mxu0 0.0
        %336 = vmatpush2.msra.mxu0 0.0
        %337 = vmatprep.subr.mxu0 0.0
        %338 = vmatpush2.msra.mxu0 0.0
        %339 = vmatprep.subr.mxu0 0.0
        %340 = vmatpush2.msra.mxu0 0.0
        %341 = vmatprep.subr.mxu0 0.0
        %342 = vmatpush2.msra.mxu0 0.0
        %343 = vmatprep.mubr.f32.mxu0 0.0
        %344 = vmatmul.mubr.f32.gmra.mxu0 %v261
        %v345 = vpop.f32.mrf.mxu0
        %v346 = vadd.f32 %v242, %v345
        %v347 = vpop.f32.mrf.mxu0
        %v348 = vadd.f32 %v242, %v347
        %349 = vmatprep.mubr.f32.mxu0 0.0
        %350 = vmatmul.mubr.f32.gmra.mxu0 %v264
        %v351 = vpop.f32.mrf.mxu0
        %v352 = vadd.f32 %v247, %v351
        %v353 = vpop.f32.mrf.mxu0
        %v354 = vadd.f32 %v247, %v353
        %355 = vmatprep.mubr.f32.mxu0 0.0
        %356 = vmatmul.mubr.f32.gmra.mxu0 %v267
        %v357 = vpop.f32.mrf.mxu0
        %v358 = vadd.f32 %v252, %v357
        %v359 = vpop.f32.mrf.mxu0
        %v360 = vadd.f32 %v252, %v359
        %361 = vmatprep.mubr.f32.mxu0 0.0
        %362 = vmatmul.mubr.f32.gmra.mxu0 %v270
        %v363 = vpop.f32.mrf.mxu0
        %v364 = vadd.f32 %v257, %v363
        %v365 = vpop.f32.mrf.mxu0
        %v366 = vadd.f32 %v257, %v365
        %367 = vdwg.mxu0
        %v368 = vmax.f32 %v346, 0.0
        %v369 = vmax.f32 %v348, 0.0
        %v370 = vmax.f32 %v352, 0.0
        %v371 = vmax.f32 %v354, 0.0
        %v372 = vmax.f32 %v358, 0.0
        %v373 = vmax.f32 %v360, 0.0
        %v374 = vmax.f32 %v364, 0.0
        %v375 = vmax.f32 %v366, 0.0
        %376 = vst [vmem:[#allocation2] sm:$0xff] 0.0
        %377 = vst [vmem:[#allocation2 + $0x8] sm:$0xff] 0.0
        %vm378 = vcmask 277504
        %379 = vst.msk [vmem:[#allocation2 + $0x10] sm:$0xff] %vm378, 0.0
        %380 = vst [vmem:[#allocation2 + $0x18] sm:$0xff] 0.0
        %381 = vst [vmem:[#allocation2 + $0x20] sm:$0xff] 0.0
        %382 = vst.msk [vmem:[#allocation2 + $0x28] sm:$0xff] %vm378, 0.0
        %383 = vst [vmem:[#allocation2 + $0x30] sm:$0xff] 0.0
        %384 = vst [vmem:[#allocation2 + $0x38] sm:$0xff] 0.0
        %385 = vst.msk [vmem:[#allocation2 + $0x40] sm:$0xff] %vm378, 0.0
        %386 = vst [vmem:[#allocation2 + $0x48] sm:$0xff] 0.0
        %387 = vst [vmem:[#allocation2 + $0x50] sm:$0xff] 0.0
        %388 = vst.msk [vmem:[#allocation2 + $0x58] sm:$0xff] %vm378, 0.0
        %397 = vrot.lane.b32.xlu0 %v368, 17
        %v398 = vpop.permute.xlu0 %397
        %399 = vrot.lane.b32.xlu0 %v369, 17
        %v400 = vpop.permute.xlu0 %399
        %401 = vrot.lane.b32.xlu0 %v370, 17
        %v402 = vpop.permute.xlu0 %401
        %403 = vrot.lane.b32.xlu0 %v371, 17
        %v404 = vpop.permute.xlu0 %403
        %405 = vrot.lane.b32.xlu0 %v372, 17
        %v406 = vpop.permute.xlu0 %405
        %407 = vrot.lane.b32.xlu0 %v373, 17
        %v408 = vpop.permute.xlu0 %407
        %409 = vrot.lane.b32.xlu0 %v374, 17
        %v410 = vpop.permute.xlu0 %409
        %411 = vrot.lane.b32.xlu0 %v375, 17
        %v412 = vpop.permute.xlu0 %411
        %vm413 = vcmask 138240
        %v414 = vsel %vm413, %v398, %v400
        %v415 = vsel %vm413, %v402, %v404
        %v416 = vsel %vm413, %v406, %v408
        %v417 = vsel %vm413, %v410, %v412
        %vm430 = vcmask 1047688
        %431 = vst.msk [vmem:[#allocation2] sm:$0xff] %vm430, %v398
        %432 = vst [vmem:[#allocation2 + $0x8] sm:$0xff] %v414
        %433 = vst.msk [vmem:[#allocation2 + $0x10] sm:$0xff] %vm413, %v400
        %434 = vst.msk [vmem:[#allocation2 + $0x18] sm:$0xff] %vm430, %v402
        %435 = vst [vmem:[#allocation2 + $0x20] sm:$0xff] %v415
        %436 = vst.msk [vmem:[#allocation2 + $0x28] sm:$0xff] %vm413, %v404
        %437 = vst.msk [vmem:[#allocation2 + $0x30] sm:$0xff] %vm430, %v406
        %438 = vst [vmem:[#allocation2 + $0x38] sm:$0xff] %v416
        %439 = vst.msk [vmem:[#allocation2 + $0x40] sm:$0xff] %vm413, %v408
        %440 = vst.msk [vmem:[#allocation2 + $0x48] sm:$0xff] %vm430, %v410
        %441 = vst [vmem:[#allocation2 + $0x50] sm:$0xff] %v417
        %442 = vst.msk [vmem:[#allocation2 + $0x58] sm:$0xff] %vm413, %v412
        %v443 = vlaneseq
        %v444 = vand.u32 %v443, 127
        %v445 = vadd.s32 %v444, 128
        %vm446 = vcmp.lt.s32.totalorder %v444, 0
        %v447 = vsub.s32 0, %v444
        %v448 = vsel %vm446, %v447, %v444
        %v449 = vshrl.u32 %v448, 4
        %v450 = vand.u32 %v448, 15
        %v451 = vsub.s32 0, %v450
        %v452 = vsel %vm446, %v451, %v450
        %vm453 = vcmp.lt.s32.totalorder %v445, 0
        %v454 = vsub.s32 0, %v445
        %v455 = vsel %vm453, %v454, %v445
        %v456 = vshrl.u32 %v455, 4
        %v457 = vand.u32 %v455, 15
        %v458 = vsub.s32 0, %v457
        %v459 = vsel %vm453, %v458, %v457
        %vm460 = vcmp.ne.s32.totalorder %v452, 0
        %vm461 = vcmp.ne.s32.totalorder %v459, 0
        %vm462 = vcmp.lt.s32.totalorder %v452, 0
        %vm463 = vcmp.lt.s32.totalorder %v459, 0
        %vm464 = vmand %vm462, %vm460
        %vm465 = vmand %vm463, %vm461
        %v466 = vadd.s32 %v452, 16
        %v467 = vadd.s32 %v459, 16
        %v468 = vsel %vm464, %v466, %v452
        %v469 = vsel %vm465, %v467, %v459
        %vm470 = vcmp.gt.s32.totalorder %v468, 0
        %vm471 = vcmp.gt.s32.totalorder %v469, 0
        %vm472 = vcmp.lt.s32.totalorder %v468, 15
        %vm473 = vcmp.lt.s32.totalorder %v469, 15
        %v474 = vld [vmem:[#allocation2] sm:$0xff]
        %v475 = vld [vmem:[#allocation2 + $0x8] sm:$0xff]
        %v476 = vld [vmem:[#allocation2 + $0x18] sm:$0xff]
        %v477 = vld [vmem:[#allocation2 + $0x20] sm:$0xff]
        %v478 = vld [vmem:[#allocation2 + $0x30] sm:$0xff]
        %v479 = vld [vmem:[#allocation2 + $0x38] sm:$0xff]
        %v480 = vld [vmem:[#allocation2 + $0x48] sm:$0xff]
        %v481 = vld [vmem:[#allocation2 + $0x50] sm:$0xff]
        %v482 = vsel %vm470, 1, 0
        %v483 = vsel %vm471, 1, 0
        %vm484 = vcmp.eq.s32.totalorder %v482, 1
        %vm485 = vcmp.eq.s32.totalorder %v483, 1
        %v486 = vsel %vm484, %v474, 0.0
        %v487 = vsel %vm485, %v475, 0.0
        %v488 = vsel %vm484, %v476, 0.0
        %v489 = vsel %vm485, %v477, 0.0
        %v490 = vsel %vm484, %v478, 0.0
        %v491 = vsel %vm485, %v479, 0.0
        %v492 = vsel %vm484, %v480, 0.0
        %v493 = vsel %vm485, %v481, 0.0
        %v494 = vld [vmem:[#allocation2 + $0x10] sm:$0xff]
        %v495 = vld [vmem:[#allocation2 + $0x28] sm:$0xff]
        %v496 = vld [vmem:[#allocation2 + $0x40] sm:$0xff]
        %v497 = vld [vmem:[#allocation2 + $0x58] sm:$0xff]
        %v498 = vsel %vm472, 1, 0
        %v499 = vsel %vm473, 1, 0
        %vm500 = vcmp.eq.s32.totalorder %v498, 1
        %vm501 = vcmp.eq.s32.totalorder %v499, 1
        %514 = vrot.lane.b32.xlu0 %v474, 126
        %v515 = vpop.permute.xlu0 %514
        %516 = vrot.lane.b32.xlu0 %v475, 126
        %v517 = vpop.permute.xlu0 %516
        %518 = vrot.lane.b32.xlu0 %v494, 126
        %v519 = vpop.permute.xlu0 %518
        %520 = vrot.lane.b32.xlu0 %v476, 126
        %v521 = vpop.permute.xlu0 %520
        %522 = vrot.lane.b32.xlu0 %v477, 126
        %v523 = vpop.permute.xlu0 %522
        %524 = vrot.lane.b32.xlu0 %v495, 126
        %v525 = vpop.permute.xlu0 %524
        %526 = vrot.lane.b32.xlu0 %v478, 126
        %v527 = vpop.permute.xlu0 %526
        %528 = vrot.lane.b32.xlu0 %v479, 126
        %v529 = vpop.permute.xlu0 %528
        %530 = vrot.lane.b32.xlu0 %v496, 126
        %v531 = vpop.permute.xlu0 %530
        %532 = vrot.lane.b32.xlu0 %v480, 126
        %v533 = vpop.permute.xlu0 %532
        %534 = vrot.lane.b32.xlu0 %v481, 126
        %v535 = vpop.permute.xlu0 %534
        %536 = vrot.lane.b32.xlu0 %v497, 126
        %v537 = vpop.permute.xlu0 %536
        %vm538 = vcmask 1031168
        %v539 = vsel %vm538, %v515, %v517
        %v540 = vsel %vm538, %v517, %v519
        %v541 = vsel %vm538, %v521, %v523
        %v542 = vsel %vm538, %v523, %v525
        %v543 = vsel %vm538, %v527, %v529
        %v544 = vsel %vm538, %v529, %v531
        %v545 = vsel %vm538, %v533, %v535
        %v546 = vsel %vm538, %v535, %v537
        %v555 = vsel %vm500, %v539, 0.0
        %v556 = vsel %vm501, %v540, 0.0
        %v557 = vsel %vm500, %v541, 0.0
        %v558 = vsel %vm501, %v542, 0.0
        %v559 = vsel %vm500, %v543, 0.0
        %v560 = vsel %vm501, %v544, 0.0
        %v561 = vsel %vm500, %v545, 0.0
        %v562 = vsel %vm501, %v546, 0.0
        %563 = vrot.lane.b32.xlu0 %v474, 112
        %v564 = vpop.permute.xlu0 %563
        %565 = vrot.lane.b32.xlu0 %v475, 112
        %v566 = vpop.permute.xlu0 %565
        %567 = vrot.lane.b32.xlu0 %v494, 112
        %v568 = vpop.permute.xlu0 %567
        %569 = vrot.lane.b32.xlu0 %v476, 112
        %v570 = vpop.permute.xlu0 %569
        %571 = vrot.lane.b32.xlu0 %v477, 112
        %v572 = vpop.permute.xlu0 %571
        %573 = vrot.lane.b32.xlu0 %v495, 112
        %v574 = vpop.permute.xlu0 %573
        %575 = vrot.lane.b32.xlu0 %v478, 112
        %v576 = vpop.permute.xlu0 %575
        %577 = vrot.lane.b32.xlu0 %v479, 112
        %v578 = vpop.permute.xlu0 %577
        %579 = vrot.lane.b32.xlu0 %v496, 112
        %v580 = vpop.permute.xlu0 %579
        %581 = vrot.lane.b32.xlu0 %v480, 112
        %v582 = vpop.permute.xlu0 %581
        %583 = vrot.lane.b32.xlu0 %v481, 112
        %v584 = vpop.permute.xlu0 %583
        %585 = vrot.lane.b32.xlu0 %v497, 112
        %v586 = vpop.permute.xlu0 %585
        %vm587 = vcmask 916480
        %v588 = vsel %vm587, %v564, %v566
        %v589 = vsel %vm587, %v566, %v568
        %v590 = vsel %vm587, %v570, %v572
        %v591 = vsel %vm587, %v572, %v574
        %v592 = vsel %vm587, %v576, %v578
        %v593 = vsel %vm587, %v578, %v580
        %v594 = vsel %vm587, %v582, %v584
        %v595 = vsel %vm587, %v584, %v586
        %v604 = vsel %vm484, %v588, 0.0
        %v605 = vsel %vm485, %v589, 0.0
        %v606 = vsel %vm484, %v590, 0.0
        %v607 = vsel %vm485, %v591, 0.0
        %v608 = vsel %vm484, %v592, 0.0
        %v609 = vsel %vm485, %v593, 0.0
        %v610 = vsel %vm484, %v594, 0.0
        %v611 = vsel %vm485, %v595, 0.0
        %612 = vrot.lane.b32.xlu0 %v474, 110
        %v613 = vpop.permute.xlu0 %612
        %614 = vrot.lane.b32.xlu0 %v475, 110
        %v615 = vpop.permute.xlu0 %614
        %616 = vrot.lane.b32.xlu0 %v494, 110
        %v617 = vpop.permute.xlu0 %616
        %618 = vrot.lane.b32.xlu0 %v476, 110
        %v619 = vpop.permute.xlu0 %618
        %620 = vrot.lane.b32.xlu0 %v477, 110
        %v621 = vpop.permute.xlu0 %620
        %622 = vrot.lane.b32.xlu0 %v495, 110
        %v623 = vpop.permute.xlu0 %622
        %624 = vrot.lane.b32.xlu0 %v478, 110
        %v625 = vpop.permute.xlu0 %624
        %626 = vrot.lane.b32.xlu0 %v479, 110
        %v627 = vpop.permute.xlu0 %626
        %628 = vrot.lane.b32.xlu0 %v496, 110
        %v629 = vpop.permute.xlu0 %628
        %630 = vrot.lane.b32.xlu0 %v480, 110
        %v631 = vpop.permute.xlu0 %630
        %632 = vrot.lane.b32.xlu0 %v481, 110
        %v633 = vpop.permute.xlu0 %632
        %634 = vrot.lane.b32.xlu0 %v497, 110
        %v635 = vpop.permute.xlu0 %634
        %vm636 = vcmask 900096
        %v637 = vsel %vm636, %v613, %v615
        %v638 = vsel %vm636, %v615, %v617
        %v639 = vsel %vm636, %v619, %v621
        %v640 = vsel %vm636, %v621, %v623
        %v641 = vsel %vm636, %v625, %v627
        %v642 = vsel %vm636, %v627, %v629
        %v643 = vsel %vm636, %v631, %v633
        %v644 = vsel %vm636, %v633, %v635
        %v653 = vsel %vm500, %v637, 0.0
        %v654 = vsel %vm501, %v638, 0.0
        %v655 = vsel %vm500, %v639, 0.0
        %v656 = vsel %vm501, %v640, 0.0
        %v657 = vsel %vm500, %v641, 0.0
        %v658 = vsel %vm501, %v642, 0.0
        %v659 = vsel %vm500, %v643, 0.0
        %v660 = vsel %vm501, %v644, 0.0
        %661 = vrot.lane.b32.xlu0 %v474, 96
        %v662 = vpop.permute.xlu0 %661
        %663 = vrot.lane.b32.xlu0 %v475, 96
        %v664 = vpop.permute.xlu0 %663
        %665 = vrot.lane.b32.xlu0 %v494, 96
        %v666 = vpop.permute.xlu0 %665
        %667 = vrot.lane.b32.xlu0 %v476, 96
        %v668 = vpop.permute.xlu0 %667
        %669 = vrot.lane.b32.xlu0 %v477, 96
        %v670 = vpop.permute.xlu0 %669
        %671 = vrot.lane.b32.xlu0 %v495, 96
        %v672 = vpop.permute.xlu0 %671
        %673 = vrot.lane.b32.xlu0 %v478, 96
        %v674 = vpop.permute.xlu0 %673
        %675 = vrot.lane.b32.xlu0 %v479, 96
        %v676 = vpop.permute.xlu0 %675
        %677 = vrot.lane.b32.xlu0 %v496, 96
        %v678 = vpop.permute.xlu0 %677
        %679 = vrot.lane.b32.xlu0 %v480, 96
        %v680 = vpop.permute.xlu0 %679
        %681 = vrot.lane.b32.xlu0 %v481, 96
        %v682 = vpop.permute.xlu0 %681
        %683 = vrot.lane.b32.xlu0 %v497, 96
        %v684 = vpop.permute.xlu0 %683
        %vm685 = vcmask 785408
        %v686 = vsel %vm685, %v662, %v664
        %v687 = vsel %vm685, %v664, %v666
        %v688 = vsel %vm685, %v668, %v670
        %v689 = vsel %vm685, %v670, %v672
        %v690 = vsel %vm685, %v674, %v676
        %v691 = vsel %vm685, %v676, %v678
        %v692 = vsel %vm685, %v680, %v682
        %v693 = vsel %vm685, %v682, %v684
        %v702 = vsel %vm484, %v686, 0.0
        %v703 = vsel %vm485, %v687, 0.0
        %v704 = vsel %vm484, %v688, 0.0
        %v705 = vsel %vm485, %v689, 0.0
        %v706 = vsel %vm484, %v690, 0.0
        %v707 = vsel %vm485, %v691, 0.0
        %v708 = vsel %vm484, %v692, 0.0
        %v709 = vsel %vm485, %v693, 0.0
        %710 = vrot.lane.b32.xlu0 %v474, 94
        %v711 = vpop.permute.xlu0 %710
        %712 = vrot.lane.b32.xlu0 %v475, 94
        %v713 = vpop.permute.xlu0 %712
        %714 = vrot.lane.b32.xlu0 %v494, 94
        %v715 = vpop.permute.xlu0 %714
        %716 = vrot.lane.b32.xlu0 %v476, 94
        %v717 = vpop.permute.xlu0 %716
        %718 = vrot.lane.b32.xlu0 %v477, 94
        %v719 = vpop.permute.xlu0 %718
        %720 = vrot.lane.b32.xlu0 %v495, 94
        %v721 = vpop.permute.xlu0 %720
        %722 = vrot.lane.b32.xlu0 %v478, 94
        %v723 = vpop.permute.xlu0 %722
        %724 = vrot.lane.b32.xlu0 %v479, 94
        %v725 = vpop.permute.xlu0 %724
        %726 = vrot.lane.b32.xlu0 %v496, 94
        %v727 = vpop.permute.xlu0 %726
        %728 = vrot.lane.b32.xlu0 %v480, 94
        %v729 = vpop.permute.xlu0 %728
        %730 = vrot.lane.b32.xlu0 %v481, 94
        %v731 = vpop.permute.xlu0 %730
        %732 = vrot.lane.b32.xlu0 %v497, 94
        %v733 = vpop.permute.xlu0 %732
        %vm734 = vcmask 769024
        %v735 = vsel %vm734, %v711, %v713
        %v736 = vsel %vm734, %v713, %v715
        %v737 = vsel %vm734, %v717, %v719
        %v738 = vsel %vm734, %v719, %v721
        %v739 = vsel %vm734, %v723, %v725
        %v740 = vsel %vm734, %v725, %v727
        %v741 = vsel %vm734, %v729, %v731
        %v742 = vsel %vm734, %v731, %v733
        %v751 = vsel %vm500, %v735, 0.0
        %v752 = vsel %vm501, %v736, 0.0
        %v753 = vsel %vm500, %v737, 0.0
        %v754 = vsel %vm501, %v738, 0.0
        %v755 = vsel %vm500, %v739, 0.0
        %v756 = vsel %vm501, %v740, 0.0
        %v757 = vsel %vm500, %v741, 0.0
        %v758 = vsel %vm501, %v742, 0.0
        %759 = vrot.lane.b32.xlu0 %v474, 127
        %v760 = vpop.permute.xlu0 %759
        %761 = vrot.lane.b32.xlu0 %v475, 127
        %v762 = vpop.permute.xlu0 %761
        %763 = vrot.lane.b32.xlu0 %v494, 127
        %v764 = vpop.permute.xlu0 %763
        %765 = vrot.lane.b32.xlu0 %v476, 127
        %v766 = vpop.permute.xlu0 %765
        %767 = vrot.lane.b32.xlu0 %v477, 127
        %v768 = vpop.permute.xlu0 %767
        %769 = vrot.lane.b32.xlu0 %v495, 127
        %v770 = vpop.permute.xlu0 %769
        %771 = vrot.lane.b32.xlu0 %v478, 127
        %v772 = vpop.permute.xlu0 %771
        %773 = vrot.lane.b32.xlu0 %v479, 127
        %v774 = vpop.permute.xlu0 %773
        %775 = vrot.lane.b32.xlu0 %v496, 127
        %v776 = vpop.permute.xlu0 %775
        %777 = vrot.lane.b32.xlu0 %v480, 127
        %v778 = vpop.permute.xlu0 %777
        %779 = vrot.lane.b32.xlu0 %v481, 127
        %v780 = vpop.permute.xlu0 %779
        %781 = vrot.lane.b32.xlu0 %v497, 127
        %v782 = vpop.permute.xlu0 %781
        %vm783 = vcmask 1039360
        %v784 = vsel %vm783, %v760, %v762
        %v785 = vsel %vm783, %v762, %v764
        %v786 = vsel %vm783, %v766, %v768
        %v787 = vsel %vm783, %v768, %v770
        %v788 = vsel %vm783, %v772, %v774
        %v789 = vsel %vm783, %v774, %v776
        %v790 = vsel %vm783, %v778, %v780
        %v791 = vsel %vm783, %v780, %v782
        %800 = vrot.lane.b32.xlu0 %v474, 111
        %v801 = vpop.permute.xlu0 %800
        %802 = vrot.lane.b32.xlu0 %v475, 111
        %v803 = vpop.permute.xlu0 %802
        %804 = vrot.lane.b32.xlu0 %v494, 111
        %v805 = vpop.permute.xlu0 %804
        %806 = vrot.lane.b32.xlu0 %v476, 111
        %v807 = vpop.permute.xlu0 %806
        %808 = vrot.lane.b32.xlu0 %v477, 111
        %v809 = vpop.permute.xlu0 %808
        %810 = vrot.lane.b32.xlu0 %v495, 111
        %v811 = vpop.permute.xlu0 %810
        %812 = vrot.lane.b32.xlu0 %v478, 111
        %v813 = vpop.permute.xlu0 %812
        %814 = vrot.lane.b32.xlu0 %v479, 111
        %v815 = vpop.permute.xlu0 %814
        %816 = vrot.lane.b32.xlu0 %v496, 111
        %v817 = vpop.permute.xlu0 %816
        %818 = vrot.lane.b32.xlu0 %v480, 111
        %v819 = vpop.permute.xlu0 %818
        %820 = vrot.lane.b32.xlu0 %v481, 111
        %v821 = vpop.permute.xlu0 %820
        %822 = vrot.lane.b32.xlu0 %v497, 111
        %v823 = vpop.permute.xlu0 %822
        %vm824 = vcmask 908288
        %v825 = vsel %vm824, %v801, %v803
        %v826 = vsel %vm824, %v803, %v805
        %v827 = vsel %vm824, %v807, %v809
        %v828 = vsel %vm824, %v809, %v811
        %v829 = vsel %vm824, %v813, %v815
        %v830 = vsel %vm824, %v815, %v817
        %v831 = vsel %vm824, %v819, %v821
        %v832 = vsel %vm824, %v821, %v823
        %841 = vrot.lane.b32.xlu0 %v474, 95
        %v842 = vpop.permute.xlu0 %841
        %843 = vrot.lane.b32.xlu0 %v475, 95
        %v844 = vpop.permute.xlu0 %843
        %845 = vrot.lane.b32.xlu0 %v494, 95
        %v846 = vpop.permute.xlu0 %845
        %847 = vrot.lane.b32.xlu0 %v476, 95
        %v848 = vpop.permute.xlu0 %847
        %849 = vrot.lane.b32.xlu0 %v477, 95
        %v850 = vpop.permute.xlu0 %849
        %851 = vrot.lane.b32.xlu0 %v495, 95
        %v852 = vpop.permute.xlu0 %851
        %853 = vrot.lane.b32.xlu0 %v478, 95
        %v854 = vpop.permute.xlu0 %853
        %855 = vrot.lane.b32.xlu0 %v479, 95
        %v856 = vpop.permute.xlu0 %855
        %857 = vrot.lane.b32.xlu0 %v496, 95
        %v858 = vpop.permute.xlu0 %857
        %859 = vrot.lane.b32.xlu0 %v480, 95
        %v860 = vpop.permute.xlu0 %859
        %861 = vrot.lane.b32.xlu0 %v481, 95
        %v862 = vpop.permute.xlu0 %861
        %863 = vrot.lane.b32.xlu0 %v497, 95
        %v864 = vpop.permute.xlu0 %863
        %vm865 = vcmask 777216
        %v866 = vsel %vm865, %v842, %v844
        %v867 = vsel %vm865, %v844, %v846
        %v868 = vsel %vm865, %v848, %v850
        %v869 = vsel %vm865, %v850, %v852
        %v870 = vsel %vm865, %v854, %v856
        %v871 = vsel %vm865, %v856, %v858
        %v872 = vsel %vm865, %v860, %v862
        %v873 = vsel %vm865, %v862, %v864
        %v882 = vld [vmem:[%s3] sm:$0xff]
        %v883 = vld [vmem:[%s3 + $0x8] sm:$0xff]
        %v884 = vld [vmem:[%s3 + $0x10] sm:$0xff]
        %v885 = vld [vmem:[%s3 + $0x18] sm:$0xff]
        %v886 = vld [vmem:[%s3 + $0x20] sm:$0xff]
        %v887 = vld [vmem:[%s3 + $0x28] sm:$0xff]
        %v888 = vld [vmem:[%s3 + $0x30] sm:$0xff]
        %v889 = vld [vmem:[%s3 + $0x38] sm:$0xff]
        %v890 = vld [vmem:[%s3 + $0x40] sm:$0xff]
        %v891 = vld [vmem:[%s3 + $0x48] sm:$0xff]
        %v892 = vld [vmem:[%s3 + $0x50] sm:$0xff]
        %v893 = vld [vmem:[%s3 + $0x58] sm:$0xff]
        %v894 = vld [vmem:[%s3 + $0x60] sm:$0xff]
        %v895 = vld [vmem:[%s3 + $0x68] sm:$0xff]
        %v896 = vld [vmem:[%s3 + $0x70] sm:$0xff]
        %v897 = vld [vmem:[%s3 + $0x78] sm:$0xff]
        %v898 = vld [vmem:[%s3 + $0x80] sm:$0xff]
        %v899 = vld [vmem:[%s3 + $0x88] sm:$0xff]
        %v900 = vld [vmem:[%s3 + $0x90] sm:$0xff]
        %v901 = vld [vmem:[%s3 + $0x98] sm:$0xff]
        %v902 = vld [vmem:[%s3 + $0xa0] sm:$0xff]
        %v903 = vld [vmem:[%s3 + $0xa8] sm:$0xff]
        %v904 = vld [vmem:[%s3 + $0xb0] sm:$0xff]
        %v905 = vld [vmem:[%s3 + $0xb8] sm:$0xff]
        %v906 = vld [vmem:[%s4] sm:$0xff]
        %v907 = vld [vmem:[%s4 + $0x8] sm:$0xff]
        %v908 = vld [vmem:[%s4 + $0x10] sm:$0xff]
        %v909 = vld [vmem:[%s4 + $0x18] sm:$0xff]
        %v910 = vld [vmem:[%s4 + $0x20] sm:$0xff]
        %v911 = vld [vmem:[%s4 + $0x28] sm:$0xff]
        %v912 = vld [vmem:[%s4 + $0x30] sm:$0xff]
        %v913 = vld [vmem:[%s4 + $0x38] sm:$0xff]
        %915 = vset.pattern.permute.xlu0 0
        %916 = vperm.xlu0 %915, %v906
        %v917 = vpop.permute.xlu0 %916
        %920 = vset.pattern.permute.xlu0 0
        %921 = vperm.xlu0 %920, %v907
        %v922 = vpop.permute.xlu0 %921
        %925 = vset.pattern.permute.xlu0 0
        %926 = vperm.xlu0 %925, %v908
        %v927 = vpop.permute.xlu0 %926
        %930 = vset.pattern.permute.xlu0 0
        %931 = vperm.xlu0 %930, %v909
        %v932 = vpop.permute.xlu0 %931
        %935 = vset.pattern.permute.xlu0 0
        %936 = vperm.xlu0 %935, %v910
        %v937 = vpop.permute.xlu0 %936
        %940 = vset.pattern.permute.xlu0 0
        %941 = vperm.xlu0 %940, %v911
        %v942 = vpop.permute.xlu0 %941
        %945 = vset.pattern.permute.xlu0 0
        %946 = vperm.xlu0 %945, %v912
        %v947 = vpop.permute.xlu0 %946
        %950 = vset.pattern.permute.xlu0 0
        %951 = vperm.xlu0 %950, %v913
        %v952 = vpop.permute.xlu0 %951
        %vm954 = vcmask 261120
        %v956 = vsel %vm954, %v884, 0
        %v959 = vsel %vm954, %v887, 0
        %v962 = vsel %vm954, %v890, 0
        %v965 = vsel %vm954, %v893, 0
        %v968 = vsel %vm954, %v896, 0
        %v971 = vsel %vm954, %v899, 0
        %v974 = vsel %vm954, %v902, 0
        %v977 = vsel %vm954, %v905, 0
        %979 = vmatprep.subr.mxu0 %v611
        %980 = vmatpush1.msra.mxu0 %v610
        %981 = vmatprep.subr.mxu0 %v609
        %982 = vmatpush1.msra.mxu0 %v608
        %983 = vmatprep.subr.mxu0 %v607
        %984 = vmatpush1.msra.mxu0 %v606
        %985 = vmatprep.subr.mxu0 %v605
        %986 = vmatpush1.msra.mxu0 %v604
        %987 = vmatprep.subr.mxu0 %v562
        %988 = vmatpush1.msra.mxu0 %v561
        %989 = vmatprep.subr.mxu0 %v560
        %990 = vmatpush1.msra.mxu0 %v559
        %991 = vmatprep.subr.mxu0 %v558
        %992 = vmatpush1.msra.mxu0 %v557
        %993 = vmatprep.subr.mxu0 %v556
        %994 = vmatpush1.msra.mxu0 %v555
        %995 = vmatprep.subr.mxu0 %v791
        %996 = vmatpush1.msra.mxu0 %v790
        %997 = vmatprep.subr.mxu0 %v789
        %998 = vmatpush1.msra.mxu0 %v788
        %999 = vmatprep.subr.mxu0 %v787
        %1000 = vmatpush1.msra.mxu0 %v786
        %1001 = vmatprep.subr.mxu0 %v785
        %1002 = vmatpush1.msra.mxu0 %v784
        %1003 = vmatprep.subr.mxu0 %v493
        %1004 = vmatpush1.msra.mxu0 %v492
        %1005 = vmatprep.subr.mxu0 %v491
        %1006 = vmatpush1.msra.mxu0 %v490
        %1007 = vmatprep.subr.mxu0 %v489
        %1008 = vmatpush1.msra.mxu0 %v488
        %1009 = vmatprep.subr.mxu0 %v487
        %1010 = vmatpush1.msra.mxu0 %v486
        %1011 = vmatprep.subr.mxu0 %v873
        %1012 = vmatpush2.msra.mxu0 %v872
        %1013 = vmatprep.subr.mxu0 %v871
        %1014 = vmatpush2.msra.mxu0 %v870
        %1015 = vmatprep.subr.mxu0 %v869
        %1016 = vmatpush2.msra.mxu0 %v868
        %1017 = vmatprep.subr.mxu0 %v867
        %1018 = vmatpush2.msra.mxu0 %v866
        %1019 = vmatprep.subr.mxu0 %v709
        %1020 = vmatpush2.msra.mxu0 %v708
        %1021 = vmatprep.subr.mxu0 %v707
        %1022 = vmatpush2.msra.mxu0 %v706
        %1023 = vmatprep.subr.mxu0 %v705
        %1024 = vmatpush2.msra.mxu0 %v704
        %1025 = vmatprep.subr.mxu0 %v703
        %1026 = vmatpush2.msra.mxu0 %v702
        %1027 = vmatprep.subr.mxu0 %v660
        %1028 = vmatpush2.msra.mxu0 %v659
        %1029 = vmatprep.subr.mxu0 %v658
        %1030 = vmatpush2.msra.mxu0 %v657
        %1031 = vmatprep.subr.mxu0 %v656
        %1032 = vmatpush2.msra.mxu0 %v655
        %1033 = vmatprep.subr.mxu0 %v654
        %1034 = vmatpush2.msra.mxu0 %v653
        %1035 = vmatprep.subr.mxu0 %v832
        %1036 = vmatpush2.msra.mxu0 %v831
        %1037 = vmatprep.subr.mxu0 %v830
        %1038 = vmatpush2.msra.mxu0 %v829
        %1039 = vmatprep.subr.mxu0 %v828
        %1040 = vmatpush2.msra.mxu0 %v827
        %1041 = vmatprep.subr.mxu0 %v826
        %1042 = vmatpush2.msra.mxu0 %v825
        %1043 = vmatprep.mubr.f32.mxu0 %v883
        %1044 = vmatmul.mubr.f32.gmra.mxu0 %v882
        %v1045 = vpop.f32.mrf.mxu0
        %v1046 = vadd.f32 %v917, %v1045
        %v1047 = vpop.f32.mrf.mxu0
        %v1048 = vadd.f32 %v917, %v1047
        %1049 = vmatprep.mubr.f32.mxu0 %v886
        %1050 = vmatmul.mubr.f32.gmra.mxu0 %v885
        %v1051 = vpop.f32.mrf.mxu0
        %v1052 = vadd.f32 %v922, %v1051
        %v1053 = vpop.f32.mrf.mxu0
        %v1054 = vadd.f32 %v922, %v1053
        %1055 = vmatprep.mubr.f32.mxu0 %v889
        %1056 = vmatmul.mubr.f32.gmra.mxu0 %v888
        %v1057 = vpop.f32.mrf.mxu0
        %v1058 = vadd.f32 %v927, %v1057
        %v1059 = vpop.f32.mrf.mxu0
        %v1060 = vadd.f32 %v927, %v1059
        %1061 = vmatprep.mubr.f32.mxu0 %v892
        %1062 = vmatmul.mubr.f32.gmra.mxu0 %v891
        %v1063 = vpop.f32.mrf.mxu0
        %v1064 = vadd.f32 %v932, %v1063
        %v1065 = vpop.f32.mrf.mxu0
        %v1066 = vadd.f32 %v932, %v1065
        %1067 = vmatprep.mubr.f32.mxu0 %v895
        %1068 = vmatmul.mubr.f32.gmra.mxu0 %v894
        %v1069 = vpop.f32.mrf.mxu0
        %v1070 = vadd.f32 %v937, %v1069
        %v1071 = vpop.f32.mrf.mxu0
        %v1072 = vadd.f32 %v937, %v1071
        %1073 = vmatprep.mubr.f32.mxu0 %v898
        %1074 = vmatmul.mubr.f32.gmra.mxu0 %v897
        %v1075 = vpop.f32.mrf.mxu0
        %v1076 = vadd.f32 %v942, %v1075
        %v1077 = vpop.f32.mrf.mxu0
        %v1078 = vadd.f32 %v942, %v1077
        %1079 = vmatprep.mubr.f32.mxu0 %v901
        %1080 = vmatmul.mubr.f32.gmra.mxu0 %v900
        %v1081 = vpop.f32.mrf.mxu0
        %v1082 = vadd.f32 %v947, %v1081
        %v1083 = vpop.f32.mrf.mxu0
        %v1084 = vadd.f32 %v947, %v1083
        %1085 = vmatprep.mubr.f32.mxu0 %v904
        %1086 = vmatmul.mubr.f32.gmra.mxu0 %v903
        %v1087 = vpop.f32.mrf.mxu0
        %v1088 = vadd.f32 %v952, %v1087
        %v1089 = vpop.f32.mrf.mxu0
        %v1090 = vadd.f32 %v952, %v1089
        %1091 = vdwg.mxu0
        %1092 = vmatprep.subr.mxu0 0.0
        %1093 = vmatpush1.msra.mxu0 0.0
        %1094 = vmatprep.subr.mxu0 0.0
        %1095 = vmatpush1.msra.mxu0 0.0
        %1096 = vmatprep.subr.mxu0 0.0
        %1097 = vmatpush1.msra.mxu0 0.0
        %1098 = vmatprep.subr.mxu0 0.0
        %1099 = vmatpush1.msra.mxu0 0.0
        %1100 = vmatprep.subr.mxu0 0.0
        %1101 = vmatpush1.msra.mxu0 0.0
        %1102 = vmatprep.subr.mxu0 0.0
        %1103 = vmatpush1.msra.mxu0 0.0
        %1104 = vmatprep.subr.mxu0 0.0
        %1105 = vmatpush1.msra.mxu0 0.0
        %1106 = vmatprep.subr.mxu0 0.0
        %1107 = vmatpush1.msra.mxu0 0.0
        %1108 = vmatprep.subr.mxu0 0.0
        %1109 = vmatpush1.msra.mxu0 0.0
        %1110 = vmatprep.subr.mxu0 0.0
        %1111 = vmatpush1.msra.mxu0 0.0
        %1112 = vmatprep.subr.mxu0 0.0
        %1113 = vmatpush1.msra.mxu0 0.0
        %1114 = vmatprep.subr.mxu0 0.0
        %1115 = vmatpush1.msra.mxu0 0.0
        %1116 = vmatprep.subr.mxu0 %v758
        %1117 = vmatpush1.msra.mxu0 %v757
        %1118 = vmatprep.subr.mxu0 %v756
        %1119 = vmatpush1.msra.mxu0 %v755
        %1120 = vmatprep.subr.mxu0 %v754
        %1121 = vmatpush1.msra.mxu0 %v753
        %1122 = vmatprep.subr.mxu0 %v752
        %1123 = vmatpush1.msra.mxu0 %v751
        %1124 = vmatprep.subr.mxu0 0.0
        %1125 = vmatpush2.msra.mxu0 0.0
        %1126 = vmatprep.subr.mxu0 0.0
        %1127 = vmatpush2.msra.mxu0 0.0
        %1128 = vmatprep.subr.mxu0 0.0
        %1129 = vmatpush2.msra.mxu0 0.0
        %1130 = vmatprep.subr.mxu0 0.0
        %1131 = vmatpush2.msra.mxu0 0.0
        %1132 = vmatprep.subr.mxu0 0.0
        %1133 = vmatpush2.msra.mxu0 0.0
        %1134 = vmatprep.subr.mxu0 0.0
        %1135 = vmatpush2.msra.mxu0 0.0
        %1136 = vmatprep.subr.mxu0 0.0
        %1137 = vmatpush2.msra.mxu0 0.0
        %1138 = vmatprep.subr.mxu0 0.0
        %1139 = vmatpush2.msra.mxu0 0.0
        %1140 = vmatprep.subr.mxu0 0.0
        %1141 = vmatpush2.msra.mxu0 0.0
        %1142 = vmatprep.subr.mxu0 0.0
        %1143 = vmatpush2.msra.mxu0 0.0
        %1144 = vmatprep.subr.mxu0 0.0
        %1145 = vmatpush2.msra.mxu0 0.0
        %1146 = vmatprep.subr.mxu0 0.0
        %1147 = vmatpush2.msra.mxu0 0.0
        %1148 = vmatprep.subr.mxu0 0.0
        %1149 = vmatpush2.msra.mxu0 0.0
        %1150 = vmatprep.subr.mxu0 0.0
        %1151 = vmatpush2.msra.mxu0 0.0
        %1152 = vmatprep.subr.mxu0 0.0
        %1153 = vmatpush2.msra.mxu0 0.0
        %1154 = vmatprep.subr.mxu0 0.0
        %1155 = vmatpush2.msra.mxu0 0.0
        %1156 = vmatprep.mubr.f32.mxu0 0.0
        %1157 = vmatmul.mubr.f32.gmra.mxu0 %v956
        %v1158 = vpop.f32.mrf.mxu0
        %v1159 = vadd.f32 %v1046, %v1158
        %v1160 = vpop.f32.mrf.mxu0
        %v1161 = vadd.f32 %v1048, %v1160
        %1162 = vmatprep.mubr.f32.mxu0 0.0
        %1163 = vmatmul.mubr.f32.gmra.mxu0 %v959
        %v1164 = vpop.f32.mrf.mxu0
        %v1165 = vadd.f32 %v1052, %v1164
        %v1166 = vpop.f32.mrf.mxu0
        %v1167 = vadd.f32 %v1054, %v1166
        %1168 = vmatprep.mubr.f32.mxu0 0.0
        %1169 = vmatmul.mubr.f32.gmra.mxu0 %v962
        %v1170 = vpop.f32.mrf.mxu0
        %v1171 = vadd.f32 %v1058, %v1170
        %v1172 = vpop.f32.mrf.mxu0
        %v1173 = vadd.f32 %v1060, %v1172
        %1174 = vmatprep.mubr.f32.mxu0 0.0
        %1175 = vmatmul.mubr.f32.gmra.mxu0 %v965
        %v1176 = vpop.f32.mrf.mxu0
        %v1177 = vadd.f32 %v1064, %v1176
        %v1178 = vpop.f32.mrf.mxu0
        %v1179 = vadd.f32 %v1066, %v1178
        %1180 = vmatprep.mubr.f32.mxu0 0.0
        %1181 = vmatmul.mubr.f32.gmra.mxu0 %v968
        %v1182 = vpop.f32.mrf.mxu0
        %v1183 = vadd.f32 %v1070, %v1182
        %v1184 = vpop.f32.mrf.mxu0
        %v1185 = vadd.f32 %v1072, %v1184
        %1186 = vmatprep.mubr.f32.mxu0 0.0
        %1187 = vmatmul.mubr.f32.gmra.mxu0 %v971
        %v1188 = vpop.f32.mrf.mxu0
        %v1189 = vadd.f32 %v1076, %v1188
        %v1190 = vpop.f32.mrf.mxu0
        %v1191 = vadd.f32 %v1078, %v1190
        %1192 = vmatprep.mubr.f32.mxu0 0.0
        %1193 = vmatmul.mubr.f32.gmra.mxu0 %v974
        %v1194 = vpop.f32.mrf.mxu0
        %v1195 = vadd.f32 %v1082, %v1194
        %v1196 = vpop.f32.mrf.mxu0
        %v1197 = vadd.f32 %v1084, %v1196
        %1198 = vmatprep.mubr.f32.mxu0 0.0
        %1199 = vmatmul.mubr.f32.gmra.mxu0 %v977
        %v1200 = vpop.f32.mrf.mxu0
        %v1201 = vadd.f32 %v1088, %v1200
        %v1202 = vpop.f32.mrf.mxu0
        %v1203 = vadd.f32 %v1090, %v1202
        %1204 = vdwg.mxu0
        %v1205 = vmax.f32 %v1159, 0.0
        %v1206 = vmax.f32 %v1161, 0.0
        %v1207 = vmax.f32 %v1165, 0.0
        %v1208 = vmax.f32 %v1167, 0.0
        %v1209 = vmax.f32 %v1171, 0.0
        %v1210 = vmax.f32 %v1173, 0.0
        %v1211 = vmax.f32 %v1177, 0.0
        %v1212 = vmax.f32 %v1179, 0.0
        %v1213 = vmax.f32 %v1183, 0.0
        %v1214 = vmax.f32 %v1185, 0.0
        %v1215 = vmax.f32 %v1189, 0.0
        %v1216 = vmax.f32 %v1191, 0.0
        %v1217 = vmax.f32 %v1195, 0.0
        %v1218 = vmax.f32 %v1197, 0.0
        %v1219 = vmax.f32 %v1201, 0.0
        %v1220 = vmax.f32 %v1203, 0.0
        %1221 = vst [vmem:[%s217] sm:$0xff] %v1205
        %1222 = vst [vmem:[%s217 + $0x8] sm:$0xff] %v1206
        %1223 = vst [vmem:[%s217 + $0x10] sm:$0xff] %v1207
        %1224 = vst [vmem:[%s217 + $0x18] sm:$0xff] %v1208
        %1225 = vst [vmem:[%s217 + $0x20] sm:$0xff] %v1209
        %1226 = vst [vmem:[%s217 + $0x28] sm:$0xff] %v1210
        %1227 = vst [vmem:[%s217 + $0x30] sm:$0xff] %v1211
        %1228 = vst [vmem:[%s217 + $0x38] sm:$0xff] %v1212
        %1229 = vst [vmem:[%s217 + $0x40] sm:$0xff] %v1213
        %1230 = vst [vmem:[%s217 + $0x48] sm:$0xff] %v1214
        %1231 = vst [vmem:[%s217 + $0x50] sm:$0xff] %v1215
        %1232 = vst [vmem:[%s217 + $0x58] sm:$0xff] %v1216
        %1233 = vst [vmem:[%s217 + $0x60] sm:$0xff] %v1217
        %1234 = vst [vmem:[%s217 + $0x68] sm:$0xff] %v1218
        %1235 = vst [vmem:[%s217 + $0x70] sm:$0xff] %v1219
        %1236 = vst [vmem:[%s217 + $0x78] sm:$0xff] %v1220
        %s1237 = sand.u32 %s137, 1
        %s1238 = scalar_lea.sflag [#allocation4], %s1237
        %s1239 = sand.u32 %s137, 1
        %s1240 = smul.addr %s1239, 128
        %s1241 = scalar_lea.vmem [#allocation3], %s1240
        // Predicated region
        $region41: #{tpu_custom_call.1} parent=39 // pred_check
          %p1242 = pneg %p147
        $region42: #{tpu_custom_call.1} parent=39 // pred_check_branch
          %1244 = sbr.rel (%p1242) target = $region44
        $region43: #{tpu_custom_call.1} parent=39 // pred_region
          %s1246 = ssub.s32 2048, 2048
          %1247 = vsyncadd %s1238, %s1246
          %s1248 = smul.addr %s19, 16
          %s1249 = smul.addr %s1248, 128
          %s1250 = scalar_lea.hbm %s5, %s1249
          %s1251 = sshll.u32 %s1241, 4
          %s1252 = int_to_ptr.vmem [resolvable:$true] %s1251
          %1257 = dma.vmem_to_hbm [thread:$0]  %s1252, 2048, %s1250, %s1238, 256, 256, 16
        $region44: #{tpu_custom_call.1} parent=39 // pred_fallthru
          _
      $region40: #{tpu_custom_call.1} parent=5 // pred_fallthru
        _
      %p1258 = scmp.le.s32.totalorder 2, %s14
      // Predicated region
      $region45: #{tpu_custom_call.1} parent=5 // pred_check
        %p1259 = pneg %p1258
      $region46: #{tpu_custom_call.1} parent=5 // pred_check_branch
        %1261 = sbr.rel (%p1259) target = $region48
      $region47: #{tpu_custom_call.1} parent=5 // pred_region
        %s1262 = ssub.s32 %s14, 2
        // Predicated region
        $region49: #{tpu_custom_call.1} parent=47 // pred_check
          %p1263 = pneg %p153
        $region50: #{tpu_custom_call.1} parent=47 // pred_check_branch
          %1265 = sbr.rel (%p1263) target = $region52
        $region51: #{tpu_custom_call.1} parent=47 // pred_region
          %s1266 = sand.u32 %s138, 1
          %s1267 = scalar_lea.sflag [#allocation4], %s1266
          %s1268 = sand.u32 %s138, 1
          %s1269 = smul.addr %s1268, 128
          %s1270 = scalar_lea.vmem [#allocation3], %s1269
          %1271 = dma.done %s1267, 2048
        $region52: #{tpu_custom_call.1} parent=47 // pred_fallthru
          _
      $region48: #{tpu_custom_call.1} parent=5 // pred_fallthru
        _
    $region6: #{tpu_custom_call.1} parent=1 // loop_footer
      %s18 = sadd.s32 1, %s14
    $region7: #{tpu_custom_call.1} parent=1 // loop_footer_branch
      %13 = sbr.rel target = $region3
    $region8: #{tpu_custom_call.1} parent=1 // loop_exit
      _
    %1272 = vsyncpa [#allocation4], 1
    %s1273 = scalar_lea.sflag [#allocation4], 1
    %1274 = vsyncpa %s1273, 1

</llo_original>
